<compile_context>
chip_gen: v5e
topology: v5e:2x2
jax: 0.10.0
libtpu: 0.0.40
codegen_flags: <defaults>
</compile_context>

<pallas_src>
import functools
import math

import jax
import jax.numpy as jnp
from jax.experimental import pallas as pl
from jax.experimental.pallas import tpu as pltpu


# ----------------------------------------------------------------------------
# Tiling helpers
# ----------------------------------------------------------------------------
_VMEM_LIMIT_BYTES = 48 * 1024 * 1024   # safe on v5e/v6e (128 MiB) and v7x (64 MiB)
_TILE_BYTES_BUDGET = 6 * 1024 * 1024   # per x tile; x+out double-buffered ~4x this
_BIAS_RESIDENT_BYTES = 8 * 1024 * 1024 # cap for the resident per-row bias copy


def _round_up(x, m):
    return ((x + m - 1) // m) * m


def _pick_tile_rows(n_rows, n_lanes, itemsize):
    """Pick a sublane tile size: big (MiB-scale) blocks, multiple of 8, and at
    least 2 grid blocks when possible so v7x's two TensorCores both get work."""
    rows = _TILE_BYTES_BUDGET // max(1, n_lanes * itemsize)
    rows = max(8, min(rows, 1024))
    rows = (rows // 8) * 8
    rows = min(rows, _round_up(n_rows, 8))
    if n_rows > 8:
        rows = min(rows, max(8, _round_up((n_rows + 1) // 2, 8)))
    return rows


# ----------------------------------------------------------------------------
# Kernel 1: per-channel mean over (B, H, W)  (== x.mean(dim=(0,2,3)) in torch)
#   Row sums over the native (B*C, H*W) view -> (B*C, 1); tiny finish in JAX.
# ----------------------------------------------------------------------------
def _row_sum_kernel(x_ref, o_ref):
    o_ref[...] = jnp.sum(x_ref[...].astype(jnp.float32), axis=1, keepdims=True)


def channel_mean(x):
    """Mean over batch & spatial dims for each channel.  x is NCHW."""
    B, C, H, W = x.shape
    R, L = B * C, H * W
    x2 = x.reshape(R, L)
    tr = _pick_tile_rows(R, L, x2.dtype.itemsize)
    row_sums = pl.pallas_call(
        _row_sum_kernel,
        out_shape=jax.ShapeDtypeStruct((R, 1), jnp.float32),
        grid=(pl.cdiv(R, tr),),
        in_specs=[pl.BlockSpec((tr, L), lambda i: (i, 0))],
        out_specs=pl.BlockSpec((tr, 1), lambda i: (i, 0)),
        compiler_params=pltpu.CompilerParams(
            dimension_semantics=("parallel",),
            vmem_limit_bytes=_VMEM_LIMIT_BYTES),
    )(x2)
    # finish the mean over batch on the tiny (B, C) result in plain JAX
    return row_sums.reshape(B, C).sum(axis=0) / float(B * H * W)


# ----------------------------------------------------------------------------
# Kernel 2: gated activation (elementwise hot path)
#   gate = sigmoid(gamma1 * x - freq_factor * freq_magnitude[channel])
#   act  = x * gate + 0.05 * sin(phi * x)   (+ optional skip blend)
# ----------------------------------------------------------------------------
def _fftgate_kernel(scal_ref, bias_ref, x_ref, o_ref, *,
                    tile_rows, slice_bias_rows, use_skip):
    # scal_ref (SMEM, f32[2]): [0]=clamped gamma1, [1]=phi
    g = scal_ref[0]
    phi = scal_ref[1]
    x = x_ref[...].astype(jnp.float32)                     # (tile_rows, L)
    if slice_bias_rows:
        # bias resident in VMEM: slice this tile's rows (sublane-aligned start)
        start = pl.multiple_of(pl.program_id(0) * tile_rows, tile_rows)
        bias = bias_ref[pl.ds(start, tile_rows), :]        # (tile_rows, 1)
    else:
        bias = bias_ref[...]                               # (tile_rows,1) or (1,C)
    z = g * x - bias.astype(jnp.float32)
    # sigmoid(z) == 0.5 * (1 + tanh(z/2)): one EUP op, avoids exp + divide.
    gate = 0.5 * (1.0 + jnp.tanh(0.5 * z))
    act = x * gate + 0.05 * jnp.sin(phi * x)
    if use_skip:
        act = 0.95 * act + 0.05 * x
    o_ref[...] = act.astype(o_ref.dtype)


def fftgate_elementwise(x, freq_magnitude, gamma1_clamped, freq_factor, phi,
                        use_skip=False):
    B, C, H, W = x.shape
    HW = H * W
    scal = jnp.stack([jnp.asarray(gamma1_clamped, jnp.float32),
                      jnp.asarray(phi, jnp.float32)])
    bias_c = (freq_factor * freq_magnitude).astype(jnp.float32)      # (C,)

    channels_on_lanes = (HW < 128) and (C >= 128)
    if channels_on_lanes:
        # Late stages (8x8 / 4x4 maps): channels on lanes keeps stores lane-dense
        # and the bias collapses to a single resident (1, C) lane vector.
        x2 = jnp.transpose(x, (0, 2, 3, 1)).reshape(B * HW, C)
        R, L = B * HW, C
        tr = _pick_tile_rows(R, L, x2.dtype.itemsize)
        bias = bias_c.reshape(1, C)
        bias_spec = pl.BlockSpec((1, C), lambda i: (0, 0))
        slice_bias_rows = False
    else:
        # Main path: native NCHW layout flattened to (B*C, H*W), no transpose.
        x2 = x.reshape(B * C, HW)
        R, L = B * C, HW
        tr = _pick_tile_rows(R, L, x2.dtype.itemsize)
        n_blocks = pl.cdiv(R, tr)
        Rpad = n_blocks * tr
        bias = jnp.broadcast_to(bias_c.reshape(1, C), (B, C)).reshape(R, 1)
        if Rpad * 512 <= _BIAS_RESIDENT_BYTES:
            # keep the full per-row bias resident across all grid steps
            if Rpad > R:
                bias = jnp.pad(bias, ((0, Rpad - R), (0, 0)))  # tiny array, cheap
            bias_spec = pl.BlockSpec((Rpad, 1), lambda i: (0, 0))
            slice_bias_rows = True
        else:
            bias_spec = pl.BlockSpec((tr, 1), lambda i: (i, 0))
            slice_bias_rows = False

    out = pl.pallas_call(
        functools.partial(_fftgate_kernel, tile_rows=tr,
                          slice_bias_rows=slice_bias_rows, use_skip=use_skip),
        out_shape=jax.ShapeDtypeStruct((R, L), x.dtype),
        grid=(pl.cdiv(R, tr),),
        in_specs=[
            pl.BlockSpec(memory_space=pltpu.MemorySpace.SMEM),   # scalars
            bias_spec,                                           # channel bias
            pl.BlockSpec((tr, L), lambda i: (i, 0)),             # x tile
        ],
        out_specs=pl.BlockSpec((tr, L), lambda i: (i, 0)),
        compiler_params=pltpu.CompilerParams(
            dimension_semantics=("parallel",),
            vmem_limit_bytes=_VMEM_LIMIT_BYTES),
    )(scal, bias, x2)

    if channels_on_lanes:
        return out.reshape(B, H, W, C).transpose(0, 3, 1, 2)
    return out.reshape(B, C, H, W)


# ----------------------------------------------------------------------------
# Full forward (history update + spectral stats glue + Pallas hot path)
# ----------------------------------------------------------------------------
def fftgate_forward(x, gamma1, phi, history, epoch=0, use_skip=False):
    """Functional equivalent of FFTGate.forward with enable_history=True.

    history: (history_len, C) activation history buffer (zeros if fresh).
    Returns (activation, new_history).
    """
    ch_mean = channel_mean(x)                                   # (C,)  (Pallas)
    new_history = jnp.concatenate([history[1:], ch_mean[None, :]], axis=0)

    # TODO(synk): FFT over the tiny (history_len, C) buffer has no Pallas
    # primitive; it is O(T*C) bookkeeping and stays in jnp.fft outside kernels.
    freq = jnp.fft.fft(new_history, axis=0)
    fm = jnp.abs(freq).mean(axis=0)
    fm = jnp.clip(fm, 0.05, 1.5)
    smoothing = max(0.1, 1.0 / (epoch + 10))
    fm = (1.0 - smoothing) * fm + smoothing * fm.mean()         # (C,)

    gamma1_c = jnp.clip(gamma1, 0.1, 6.0)[0]
    freq_factor = min(0.3 + 0.007 * epoch, 0.8)

    act = fftgate_elementwise(x, fm, gamma1_c, freq_factor, phi,
                              use_skip=use_skip)
    return act, new_history


# ----------------------------------------------------------------------------
# Pure-JAX reference (mirrors the PyTorch forward exactly) for validation
# ----------------------------------------------------------------------------
def fftgate_reference(x, gamma1, phi, history, epoch=0, use_skip=False):
    ch_mean = x.mean(axis=(0, 2, 3))
    new_history = jnp.concatenate([history[1:], ch_mean[None, :]], axis=0)
    freq = jnp.fft.fft(new_history, axis=0)
    fm = jnp.abs(freq).mean(axis=0)
    fm = jnp.clip(fm, 0.05, 1.5)
    smoothing = max(0.1, 1.0 / (epoch + 10))
    fm = (1.0 - smoothing) * fm + smoothing * fm.mean()
    fm = fm.reshape(1, -1, 1, 1)
    g = jnp.clip(gamma1, 0.1, 6.0)
    freq_factor = min(0.3 + 0.007 * epoch, 0.8)
    gate = jax.nn.sigmoid(g * x - freq_factor * fm)
    act = x * gate + 0.05 * jnp.sin(phi * x)
    if use_skip:
        act = 0.95 * act + 0.05 * x
    return act, new_history


if __name__ == "__main__":
    key = jax.random.PRNGKey(0)
    history_len = 15
    phi = jnp.float32(0.1)                                   # registered buffer
    gamma1 = jnp.full((1,), 1.5, dtype=jnp.float32)          # nn.Parameter

    # Case 1: early-stage shape (H*W >= 128 -> native (B*C, H*W) layout)
    B, C, H, W = 2, 4, 16, 16
    x1 = jax.random.normal(key, (B, C, H, W), dtype=jnp.float32)
    hist1 = jnp.zeros((history_len, C), dtype=jnp.float32)
    act1, _ = fftgate_forward(x1, gamma1, phi, hist1, epoch=0, use_skip=False)
    act1 = jax.block_until_ready(act1)
    ref1, _ = fftgate_reference(x1, gamma1, phi, hist1, epoch=0, use_skip=False)
    err1 = float(jnp.max(jnp.abs(act1 - ref1)))
    assert jnp.allclose(act1, ref1, atol=1e-5, rtol=1e-5), f"case1 max_err={err1}"

    # Case 2: late-stage shape (H*W < 128, C >= 128 -> channels-on-lanes layout)
    B2, C2, H2, W2 = 2, 128, 4, 4
    x2 = jax.random.normal(jax.random.PRNGKey(1), (B2, C2, H2, W2),
                           dtype=jnp.float32)
    hist2 = jnp.zeros((history_len, C2), dtype=jnp.float32)
    act2, _ = fftgate_forward(x2, gamma1, phi, hist2, epoch=3, use_skip=True)
    act2 = jax.block_until_ready(act2)
    ref2, _ = fftgate_reference(x2, gamma1, phi, hist2, epoch=3, use_skip=True)
    err2 = float(jnp.max(jnp.abs(act2 - ref2)))
    assert jnp.allclose(act2, ref2, atol=1e-5, rtol=1e-5), f"case2 max_err={err2}"

    print("KERNEL_OK")
</pallas_src>

<mosaic_0001>
module attributes {stable_mosaic.version = 11 : i64} {
  func.func @_row_sum_kernel(%arg0: i32, %arg1: memref<8x256xf32, #tpu.memory_space<vmem>>, %arg2: memref<8x1xf32, #tpu.memory_space<vmem>>) attributes {dimension_semantics = [#tpu.dimension_semantics<parallel>], iteration_bounds = array<i64: 1>, scalar_prefetch = 0 : i64, scratch_operands = 0 : i64, tpu.core_type = #tpu.core_type<tc>, window_params = [{transform_indices = @transform_0, window_bounds = array<i64: 8, 256>}, {transform_indices = @transform_1, window_bounds = array<i64: 8, 1>}]} {
    %c0 = arith.constant 0 : index
    %c0_0 = arith.constant 0 : index
    %0 = vector.load %arg1[%c0, %c0_0] : memref<8x256xf32, #tpu.memory_space<vmem>>, vector<8x256xf32>
    %cst = arith.constant dense<0.000000e+00> : vector<8xf32>
    %1 = vector.multi_reduction <add>, %0, %cst [1] : vector<8x256xf32> to vector<8xf32>
    %2 = vector.shape_cast %1 : vector<8xf32> to vector<8x1xf32>
    %c0_1 = arith.constant 0 : index
    %c0_2 = arith.constant 0 : index
    %3 = vector.load %arg2[%c0_1, %c0_2] : memref<8x1xf32, #tpu.memory_space<vmem>>, vector<8x1xf32>
    tpu.vector_store %arg2[%c0_1, %c0_2], %2 {strides = array<i32>} : memref<8x1xf32, #tpu.memory_space<vmem>>, vector<8x1xf32>,
    return
  }
  func.func @transform_0(%arg0: i32) -> (i32, i32) {
    %c0_i32 = arith.constant 0 : i32
    %c0_i32_0 = arith.constant 0 : i32
    return %arg0, %c0_i32 : i32, i32
  }
  func.func @transform_1(%arg0: i32) -> (i32, i32) {
    %c0_i32 = arith.constant 0 : i32
    %c0_i32_0 = arith.constant 0 : i32
    return %arg0, %c0_i32 : i32, i32
  }
}

</mosaic_0001>

<llo_original>
// kernel: tpu_custom_call.1
$region0: #{tpu_custom_call.1}
  #allocation0 [shape = 'u32[]', space=smem, size = 0x4, offset = 0x4, fixed_abs, tag = 'smem constant byte address 0x4 - core index']
  #allocation1 [shape = 'u32[72,128]{1,0:T(1,128)}', space=vmem, size = 0x9000, scoped, tag = 'internal scratch']
  %s0 = inlined_call_operand.hbm [shape: f32[8,256], index: 0, kind: input, shape index: {}]
  %s1 = inlined_call_operand.vmem [shape: f32[8,1], index: 1, kind: output, shape index: {}]
  %s2 = sld [smem:[#allocation0]]
  $region18: #{tpu_custom_call.1} parent=0
    _
  %s4 = ssub.s32 1, %s2
  %s5 = scalar_select 0, %s4, %s2
  $region1: #{tpu_custom_call.1} parent=0
    #allocation2 [shape = 'u8[8192]{0}', space=vmem, size = 0x2000, scoped, tag = 'input window, operand 0, single buffered']
    #allocation3 [shape = 's32[1]{0}', space=sflag, size = 0x4, scoped, tag = 'scoped memory for tpu_custom_call.1']
    %6 = vsyncpa [#allocation3], 0
    // Predicated region
    $region2: #{tpu_custom_call.1} parent=1 // pred_check
      _
    $region3: #{tpu_custom_call.1} parent=1 // pred_check_branch
      %8 = sbr.rel (0) target = $region5
    $region4: #{tpu_custom_call.1} parent=1 // pred_region
      %10 = vsyncadd [#allocation3], 0
      %s12 = sshll.u32 %s0, 4
      %s13 = int_to_ptr.hbm [resolvable:$true] %s12
      %s14 = sshll.u32 [#allocation2], 4
      %s15 = int_to_ptr.vmem [resolvable:$true] %s14
      %17 = dma.hbm_to_vmem [thread:$0]  %s13, 256, %s15, [#allocation3]
    $region5: #{tpu_custom_call.1} parent=1 // pred_fallthru
      _
    // Predicated region
    $region6: #{tpu_custom_call.1} parent=1 // pred_check
      _
    $region7: #{tpu_custom_call.1} parent=1 // pred_check_branch
      %19 = sbr.rel (0) target = $region9
    $region8: #{tpu_custom_call.1} parent=1 // pred_region
      %21 = dma.done [#allocation3], 256
    $region9: #{tpu_custom_call.1} parent=1 // pred_fallthru
      _
    %v22 = vld [vmem:[#allocation2] sm:$0xff]
    %v23 = vld [vmem:[#allocation2 + $0x8] sm:$0xff]
    %v24 = vadd.f32 %v22, %v23
    %25 = vadd.xlane.f32.xlu0 %v24
    %v26 = vpop.xlane.xlu0 %25
    %vm27 = vcmask 7168
    %28 = vst.msk [vmem:[%s1] sm:$0xff] %vm27, %v26
    // Predicated region
    $region10: #{tpu_custom_call.1} parent=1 // pred_check
      _
    $region11: #{tpu_custom_call.1} parent=1 // pred_check_branch
      %30 = sbr.rel (0) target = $region13
    $region12: #{tpu_custom_call.1} parent=1 // pred_region
      _
    $region13: #{tpu_custom_call.1} parent=1 // pred_fallthru
      _
    // Predicated region
    $region14: #{tpu_custom_call.1} parent=1 // pred_check
      _
    $region15: #{tpu_custom_call.1} parent=1 // pred_check_branch
      %32 = sbr.rel (0) target = $region17
    $region16: #{tpu_custom_call.1} parent=1 // pred_region
      _
    $region17: #{tpu_custom_call.1} parent=1 // pred_fallthru
      _
    %33 = vsyncpa [#allocation3], 1

</llo_original>
